<compile_context>
chip_gen: v7x
topology: tpu7x:2x2x1
jax: 0.10.0
libtpu: 0.0.40
codegen_flags: <defaults>
</compile_context>

<pallas_src>
import functools

import jax
import jax.numpy as jnp
from jax.experimental import pallas as pl
from jax.experimental.pallas import tpu as pltpu

_LANES = 128
_SUBLANES = 8
# Below this element count the pallas_call launch/step overhead dwarfs the
# work (one vreg is mostly padding); fall back to plain JAX so XLA fuses it.
_MIN_PALLAS_ELEMS = 128 * 128

# Working-set target for one grid step (pipelined inputs + in-kernel temps)
# and the explicit scoped-VMEM limit passed to Mosaic (budget + headroom for
# compiler-internal scratch).  48 MiB stays safely under v7x's 64 MiB per-core
# VMEM and is well under v5e/v6e's 128 MiB physical.
_VMEM_BUDGET = 40 * 1024 * 1024
_VMEM_LIMIT = 48 * 1024 * 1024

_NEG_INIT = -1e30   # init for the running row max (finite: avoids inf-inf NaNs)
_CLASS_PAD = -1e30  # class-dim pad logit -> exp() underflows to exactly 0


def _cdiv(a: int, b: int) -> int:
    return -(-a // b)


def _round_up(x: int, m: int) -> int:
    return _cdiv(x, m) * m


def _reference(y_s, y_t, T):
    """Pure-JAX reference mirroring the PyTorch module (also the tiny-size path)."""
    p_s = jax.nn.log_softmax(y_s / T, axis=1)
    p_t = jax.nn.softmax(y_t / T, axis=1)
    kl = p_t * (jnp.log(p_t) - p_s)
    return jnp.sum(kl) * T**2 / y_s.shape[0]


def _vmem_budget_and_limit():
    """VMEM sizing, clamped against the actual chip when the query is available."""
    budget, limit = _VMEM_BUDGET, _VMEM_LIMIT
    try:
        phys = int(pltpu.get_tpu_info().vmem_capacity_bytes)
        if phys > 0:
            # Leave >= 16 MiB of physical VMEM for Mosaic-internal scratch.
            limit = min(limit, max(phys - 16 * 1024 * 1024, 16 * 1024 * 1024))
            budget = min(budget, max(limit - 8 * 1024 * 1024, 8 * 1024 * 1024))
    except Exception:
        # Interpret mode / older jax field names: keep the conservative defaults.
        pass
    return budget, limit


def _distill_kl_kernel(ys_ref, yt_ref, out_ref, m_s, z_s, m_t, z_t, acc, *, inv_T: float):
    """Online-softmax KL partial sum for one (TB, TC) tile.

    Grid = (batch blocks, class blocks); the class axis is a reduction carried
    in the (TB, 1) scratch refs (running max / sum / weighted sum).  out_ref
    is a lane-dense (8, 128) block: the scalar partial for the batch block is
    replicated into it at the last class step (avoids a masked 1-lane
    vst.msk + tiny DMA writeback).
    """
    c = pl.program_id(1)

    @pl.when(c == 0)
    def _():
        m_s[...] = jnp.full_like(m_s, _NEG_INIT)
        m_t[...] = jnp.full_like(m_t, _NEG_INIT)
        z_s[...] = jnp.zeros_like(z_s)
        z_t[...] = jnp.zeros_like(z_t)
        acc[...] = jnp.zeros_like(acc)

    # Cast + 1/T scale once in VMEM (single vmul per element).
    ys = ys_ref[...].astype(jnp.float32) * inv_T
    yt = yt_ref[...].astype(jnp.float32) * inv_T

    # Student: online log-sum-exp (running max + rescaled running sum).
    m_s_new = jnp.maximum(m_s[...], jnp.max(ys, axis=1, keepdims=True))
    z_s[...] = z_s[...] * jnp.exp(m_s[...] - m_s_new) + jnp.sum(
        jnp.exp(ys - m_s_new), axis=1, keepdims=True)
    m_s[...] = m_s_new

    # Teacher: online log-sum-exp plus the running weighted sum
    #   acc = sum_j exp(yt_j - m_t) * (yt_j - ys_j)
    # The per-row normalizers are applied once at finalize, so there are no
    # per-element divides and class-block splits/padding need no fix-ups.
    m_t_new = jnp.maximum(m_t[...], jnp.max(yt, axis=1, keepdims=True))
    a_t = jnp.exp(m_t[...] - m_t_new)
    exp_t = jnp.exp(yt - m_t_new)
    # TODO(synk): if a v7x bundle dump shows VALU (not HBM) as the binding
    # slot, offload these lane-axis reductions to the idle MXU (matmul against
    # a ones (TC, 128) block) instead of VPU accumulate + XLU reduce.
    z_t[...] = z_t[...] * a_t + jnp.sum(exp_t, axis=1, keepdims=True)
    acc[...] = acc[...] * a_t + jnp.sum(exp_t * (yt - ys), axis=1, keepdims=True)
    m_t[...] = m_t_new

    @pl.when(c == pl.num_programs(1) - 1)
    def _():
        # sum_j p_t (log p_t - log p_s)
        #   = acc / z_t - (m_t + log z_t) + (m_s + log z_s)
        # Exact reciprocal: only TB of them per block, keeps the ref check tight.
        row_kl = (acc[...] * pl.reciprocal(z_t[...], approx=False)
                  - (m_t[...] + jnp.log(z_t[...]))
                  + (m_s[...] + jnp.log(z_s[...])))
        out_ref[...] = jnp.full(out_ref.shape, jnp.sum(row_kl), dtype=jnp.float32)


def _choose_tiles(batch: int, classes: int, in_itemsize: int, force_class_tile=None):
    """Pick (batch_tile, class_tile, n_class_blocks) against the VMEM budget."""
    budget, _ = _vmem_budget_and_limit()
    sub = _SUBLANES if in_itemsize >= 4 else 2 * _SUBLANES  # bf16 rows pack in pairs
    # Peak VMEM per (row, class-col) element of a tile:
    #   pipeline: 2 inputs x 2 double-buffers x itemsize
    #   temps:    ~7 live f32 (TB, TC) intermediates (ys, yt, shifted copies,
    #             exp_s, exp_t, exp_t*(yt-ys)) -- conservative per perf review.
    bytes_per_elem = 4 * in_itemsize + 7 * 4

    c_pad = _round_up(classes, _LANES)
    if force_class_tile is not None:
        tc = int(force_class_tile)
        assert tc % _LANES == 0
        n_c = _cdiv(c_pad, tc)
    elif classes * bytes_per_elem * 256 <= budget:
        # Common case: the whole class dim fits with a >=256-row batch tile.
        tc, n_c = classes, 1
    else:
        # Vocab-scale C: tile the class axis (kernel runs online softmax).
        # Aim for ~512-row batch tiles, then rebalance tc to minimize padding.
        tc_max = max(_LANES, (budget // (512 * bytes_per_elem)) // _LANES * _LANES)
        n_c = _cdiv(c_pad, tc_max)
        tc = _round_up(_cdiv(c_pad, n_c), _LANES)
        # TODO(synk): in this small-TB/huge-C regime a third input buffer
        # (pipeline_mode=pl.Buffered(3)) can recover DMA overlap when VMEM
        # headroom allows.

    per_row_bytes = tc * bytes_per_elem
    tb = int(budget // per_row_bytes)
    tb = min(tb, 1024)  # beyond ~1024 rows the mem-bound roofline is flat (v6e data)
    if batch > sub:
        # Guarantee >= 2 batch blocks so the "parallel" axis can shard across
        # both v7x TensorCores; negligible extra step cost on v5e/v6e.
        tb = min(tb, _round_up(_cdiv(batch, 2), sub))
    tb = max((tb // sub) * sub, sub)
    tb = min(tb, _round_up(batch, sub))
    return tb, tc, n_c


def distill_kl(y_s: jax.Array, y_t: jax.Array, T: float, *, _force_class_tile=None) -> jax.Array:
    """Pallas implementation of DistillKL.forward. Returns a scalar (f32)."""
    assert y_s.shape == y_t.shape and y_s.ndim == 2
    B, C = y_s.shape
    T = float(T)

    if B * C < _MIN_PALLAS_ELEMS:
        # Tiny problem: let XLA fuse it; a kernel launch can't win here.
        return _reference(y_s, y_t, T)

    itemsize = jnp.dtype(y_s.dtype).itemsize
    tb, tc, n_c = _choose_tiles(B, C, itemsize, force_class_tile=_force_class_tile)

    n_b = _cdiv(B, tb)
    Bp = n_b * tb
    Cp = n_c * tc

    if Cp != C:
        # Class padding: a hugely negative logit contributes exp() == 0 to the
        # normalizers and 0 to the weighted sum -> exactly no effect.
        pad_c = ((0, 0), (0, Cp - C))
        y_s = jnp.pad(y_s, pad_c, constant_values=_CLASS_PAD)
        y_t = jnp.pad(y_t, pad_c, constant_values=_CLASS_PAD)
    if Bp != B:
        # Batch padding: identical (all-zero) student/teacher rows give
        # diff == 0 bit-exactly, so padded rows add exactly 0 KL.
        pad_b = ((0, Bp - B), (0, 0))
        y_s = jnp.pad(y_s, pad_b)
        y_t = jnp.pad(y_t, pad_b)

    _, vmem_limit = _vmem_budget_and_limit()
    kernel = functools.partial(_distill_kl_kernel, inv_T=1.0 / T)
    partials = pl.pallas_call(
        kernel,
        out_shape=jax.ShapeDtypeStruct((n_b * _SUBLANES, _LANES), jnp.float32),
        grid=(n_b, n_c),
        in_specs=[
            pl.BlockSpec((tb, tc), lambda i, c: (i, c)),
            pl.BlockSpec((tb, tc), lambda i, c: (i, c)),
        ],
        out_specs=pl.BlockSpec((_SUBLANES, _LANES), lambda i, c: (i, 0)),
        scratch_shapes=[pltpu.VMEM((tb, 1), jnp.float32)] * 5,  # m_s, z_s, m_t, z_t, acc
        compiler_params=pltpu.CompilerParams(
            # Batch blocks are independent -> shard across TensorCores (v7x);
            # the class axis carries the online-softmax reduction state.
            dimension_semantics=("parallel", "arbitrary"),
            # Make the tile-sizing budget actually take effect on all
            # generations (v5e's default scoped limit is only 16 MiB).
            vmem_limit_bytes=vmem_limit,
        ),
    )(y_s, y_t)

    # Each block's partial is replicated over its (8, 128) slab; take one copy
    # per block and finish the reduction + T^2/B scale in plain XLA.
    per_block = partials.reshape(n_b, _SUBLANES, _LANES)[:, 0, 0]
    return jnp.sum(per_block) * (T * T) / B


if __name__ == "__main__":
    T = 4.0
    key = jax.random.PRNGKey(0)

    # ((B, C), forced class tile):
    #   (2, 10)    tiny toy shape -> fused XLA fallback path.
    #   (64, 256)  two batch blocks (both v7x TensorCores get work).
    #   (200, 200) full-C block whose last dim is not a multiple of 128.
    #   (520, 256) multi-block grid + batch padding.
    #   (96, 200)  forced class tiling: online-softmax path + class padding.
    #   (96, 384)  forced class tiling: 3 class blocks, 2 batch blocks.
    tests = [
        ((2, 10), None),
        ((64, 256), None),
        ((200, 200), None),
        ((520, 256), None),
        ((96, 200), 128),
        ((96, 384), 128),
    ]
    for (B, C), force_tc in tests:
        k1, k2 = jax.random.split(jax.random.fold_in(key, B * 10007 + C))
        y_s = jax.random.normal(k1, (B, C), dtype=jnp.float32)
        y_t = jax.random.normal(k2, (B, C), dtype=jnp.float32)

        loss = jax.block_until_ready(distill_kl(y_s, y_t, T, _force_class_tile=force_tc))
        ref = jax.block_until_ready(_reference(y_s, y_t, T))
        assert jnp.allclose(loss, ref, rtol=5e-5, atol=1e-6), (B, C, force_tc, loss, ref)

    print("KERNEL_OK")
</pallas_src>

<mosaic_0001>
module attributes {stable_mosaic.version = 11 : i64} {
  func.func @_distill_kl_kernel(%arg0: i32, %arg1: i32, %arg2: memref<32x256xf32, #tpu.memory_space<vmem>>, %arg3: memref<32x256xf32, #tpu.memory_space<vmem>>, %arg4: memref<8x128xf32, #tpu.memory_space<vmem>>, %arg5: memref<32x1xf32, #tpu.memory_space<vmem>>, %arg6: memref<32x1xf32, #tpu.memory_space<vmem>>, %arg7: memref<32x1xf32, #tpu.memory_space<vmem>>, %arg8: memref<32x1xf32, #tpu.memory_space<vmem>>, %arg9: memref<32x1xf32, #tpu.memory_space<vmem>>) attributes {dimension_semantics = [#tpu.dimension_semantics<parallel>, #tpu.dimension_semantics<arbitrary>], iteration_bounds = array<i64: 2, 1>, scalar_prefetch = 0 : i64, scratch_operands = 5 : i64, tpu.core_type = #tpu.core_type<tc>, window_params = [{transform_indices = @transform_0, window_bounds = array<i64: 32, 256>}, {transform_indices = @transform_1, window_bounds = array<i64: 32, 256>}, {transform_indices = @transform_2, window_bounds = array<i64: 8, 128>}]} {
    %c0_i32 = arith.constant 0 : i32
    %0 = arith.cmpi eq, %arg1, %c0_i32 : i32
    %1 = arith.extui %0 : i1 to i32
    %c0_i32_0 = arith.constant 0 : i32
    %2 = arith.cmpi ne, %1, %c0_i32_0 : i32
    scf.if %2 {
      %cst_36 = arith.constant -1.000000e+30 : f32
      %54 = vector.broadcast %cst_36 : f32 to vector<32x1xf32>
      %c0_37 = arith.constant 0 : index
      %c0_38 = arith.constant 0 : index
      %55 = vector.load %arg5[%c0_37, %c0_38] : memref<32x1xf32, #tpu.memory_space<vmem>>, vector<32x1xf32>
      tpu.vector_store %arg5[%c0_37, %c0_38], %54 {strides = array<i32>} : memref<32x1xf32, #tpu.memory_space<vmem>>, vector<32x1xf32>,
      %cst_39 = arith.constant -1.000000e+30 : f32
      %56 = vector.broadcast %cst_39 : f32 to vector<32x1xf32>
      %c0_40 = arith.constant 0 : index
      %c0_41 = arith.constant 0 : index
      %57 = vector.load %arg7[%c0_40, %c0_41] : memref<32x1xf32, #tpu.memory_space<vmem>>, vector<32x1xf32>
      tpu.vector_store %arg7[%c0_40, %c0_41], %56 {strides = array<i32>} : memref<32x1xf32, #tpu.memory_space<vmem>>, vector<32x1xf32>,
      %cst_42 = arith.constant 0.000000e+00 : f32
      %58 = vector.broadcast %cst_42 : f32 to vector<32x1xf32>
      %c0_43 = arith.constant 0 : index
      %c0_44 = arith.constant 0 : index
      %59 = vector.load %arg6[%c0_43, %c0_44] : memref<32x1xf32, #tpu.memory_space<vmem>>, vector<32x1xf32>
      tpu.vector_store %arg6[%c0_43, %c0_44], %58 {strides = array<i32>} : memref<32x1xf32, #tpu.memory_space<vmem>>, vector<32x1xf32>,
      %cst_45 = arith.constant 0.000000e+00 : f32
      %60 = vector.broadcast %cst_45 : f32 to vector<32x1xf32>
      %c0_46 = arith.constant 0 : index
      %c0_47 = arith.constant 0 : index
      %61 = vector.load %arg8[%c0_46, %c0_47] : memref<32x1xf32, #tpu.memory_space<vmem>>, vector<32x1xf32>
      tpu.vector_store %arg8[%c0_46, %c0_47], %60 {strides = array<i32>} : memref<32x1xf32, #tpu.memory_space<vmem>>, vector<32x1xf32>,
      %cst_48 = arith.constant 0.000000e+00 : f32
      %62 = vector.broadcast %cst_48 : f32 to vector<32x1xf32>
      %c0_49 = arith.constant 0 : index
      %c0_50 = arith.constant 0 : index
      %63 = vector.load %arg9[%c0_49, %c0_50] : memref<32x1xf32, #tpu.memory_space<vmem>>, vector<32x1xf32>
      tpu.vector_store %arg9[%c0_49, %c0_50], %62 {strides = array<i32>} : memref<32x1xf32, #tpu.memory_space<vmem>>, vector<32x1xf32>,
    } else {
    }
    %c0 = arith.constant 0 : index
    %c0_1 = arith.constant 0 : index
    %3 = vector.load %arg2[%c0, %c0_1] : memref<32x256xf32, #tpu.memory_space<vmem>>, vector<32x256xf32>
    %cst = arith.constant 2.500000e-01 : f32
    %4 = vector.broadcast %cst : f32 to vector<32x256xf32>
    %5 = arith.mulf %3, %4 : vector<32x256xf32>
    %c0_2 = arith.constant 0 : index
    %c0_3 = arith.constant 0 : index
    %6 = vector.load %arg3[%c0_2, %c0_3] : memref<32x256xf32, #tpu.memory_space<vmem>>, vector<32x256xf32>
    %cst_4 = arith.constant 2.500000e-01 : f32
    %7 = vector.broadcast %cst_4 : f32 to vector<32x256xf32>
    %8 = arith.mulf %6, %7 : vector<32x256xf32>
    %c0_5 = arith.constant 0 : index
    %c0_6 = arith.constant 0 : index
    %9 = vector.load %arg5[%c0_5, %c0_6] : memref<32x1xf32, #tpu.memory_space<vmem>>, vector<32x1xf32>
    %cst_7 = arith.constant dense<0xFF800000> : vector<32xf32>
    %10 = vector.multi_reduction <maximumf>, %5, %cst_7 [1] : vector<32x256xf32> to vector<32xf32>
    %11 = vector.shape_cast %10 : vector<32xf32> to vector<32x1xf32>
    %12 = arith.maximumf %9, %11 : vector<32x1xf32>
    %c0_8 = arith.constant 0 : index
    %c0_9 = arith.constant 0 : index
    %13 = vector.load %arg6[%c0_8, %c0_9] : memref<32x1xf32, #tpu.memory_space<vmem>>, vector<32x1xf32>
    %c0_10 = arith.constant 0 : index
    %c0_11 = arith.constant 0 : index
    %14 = vector.load %arg5[%c0_10, %c0_11] : memref<32x1xf32, #tpu.memory_space<vmem>>, vector<32x1xf32>
    %15 = arith.subf %14, %12 : vector<32x1xf32>
    %16 = math.exp %15 : vector<32x1xf32>
    %17 = arith.mulf %13, %16 : vector<32x1xf32>
    %18 = vector.broadcast %12 : vector<32x1xf32> to vector<32x256xf32>
    %19 = arith.subf %5, %18 : vector<32x256xf32>
    %20 = math.exp %19 : vector<32x256xf32>
    %cst_12 = arith.constant dense<0.000000e+00> : vector<32xf32>
    %21 = vector.multi_reduction <add>, %20, %cst_12 [1] : vector<32x256xf32> to vector<32xf32>
    %22 = vector.shape_cast %21 : vector<32xf32> to vector<32x1xf32>
    %23 = arith.addf %17, %22 : vector<32x1xf32>
    %c0_13 = arith.constant 0 : index
    %c0_14 = arith.constant 0 : index
    %24 = vector.load %arg6[%c0_13, %c0_14] : memref<32x1xf32, #tpu.memory_space<vmem>>, vector<32x1xf32>
    tpu.vector_store %arg6[%c0_13, %c0_14], %23 {strides = array<i32>} : memref<32x1xf32, #tpu.memory_space<vmem>>, vector<32x1xf32>,
    %c0_15 = arith.constant 0 : index
    %c0_16 = arith.constant 0 : index
    %25 = vector.load %arg5[%c0_15, %c0_16] : memref<32x1xf32, #tpu.memory_space<vmem>>, vector<32x1xf32>
    tpu.vector_store %arg5[%c0_15, %c0_16], %12 {strides = array<i32>} : memref<32x1xf32, #tpu.memory_space<vmem>>, vector<32x1xf32>,
    %c0_17 = arith.constant 0 : index
    %c0_18 = arith.constant 0 : index
    %26 = vector.load %arg7[%c0_17, %c0_18] : memref<32x1xf32, #tpu.memory_space<vmem>>, vector<32x1xf32>
    %cst_19 = arith.constant dense<0xFF800000> : vector<32xf32>
    %27 = vector.multi_reduction <maximumf>, %8, %cst_19 [1] : vector<32x256xf32> to vector<32xf32>
    %28 = vector.shape_cast %27 : vector<32xf32> to vector<32x1xf32>
    %29 = arith.maximumf %26, %28 : vector<32x1xf32>
    %c0_20 = arith.constant 0 : index
    %c0_21 = arith.constant 0 : index
    %30 = vector.load %arg7[%c0_20, %c0_21] : memref<32x1xf32, #tpu.memory_space<vmem>>, vector<32x1xf32>
    %31 = arith.subf %30, %29 : vector<32x1xf32>
    %32 = math.exp %31 : vector<32x1xf32>
    %33 = vector.broadcast %29 : vector<32x1xf32> to vector<32x256xf32>
    %34 = arith.subf %8, %33 : vector<32x256xf32>
    %35 = math.exp %34 : vector<32x256xf32>
    %c0_22 = arith.constant 0 : index
    %c0_23 = arith.constant 0 : index
    %36 = vector.load %arg8[%c0_22, %c0_23] : memref<32x1xf32, #tpu.memory_space<vmem>>, vector<32x1xf32>
    %37 = arith.mulf %36, %32 : vector<32x1xf32>
    %cst_24 = arith.constant dense<0.000000e+00> : vector<32xf32>
    %38 = vector.multi_reduction <add>, %35, %cst_24 [1] : vector<32x256xf32> to vector<32xf32>
    %39 = vector.shape_cast %38 : vector<32xf32> to vector<32x1xf32>
    %40 = arith.addf %37, %39 : vector<32x1xf32>
    %c0_25 = arith.constant 0 : index
    %c0_26 = arith.constant 0 : index
    %41 = vector.load %arg8[%c0_25, %c0_26] : memref<32x1xf32, #tpu.memory_space<vmem>>, vector<32x1xf32>
    tpu.vector_store %arg8[%c0_25, %c0_26], %40 {strides = array<i32>} : memref<32x1xf32, #tpu.memory_space<vmem>>, vector<32x1xf32>,
    %c0_27 = arith.constant 0 : index
    %c0_28 = arith.constant 0 : index
    %42 = vector.load %arg9[%c0_27, %c0_28] : memref<32x1xf32, #tpu.memory_space<vmem>>, vector<32x1xf32>
    %43 = arith.mulf %42, %32 : vector<32x1xf32>
    %44 = arith.subf %8, %5 : vector<32x256xf32>
    %45 = arith.mulf %35, %44 : vector<32x256xf32>
    %cst_29 = arith.constant dense<0.000000e+00> : vector<32xf32>
    %46 = vector.multi_reduction <add>, %45, %cst_29 [1] : vector<32x256xf32> to vector<32xf32>
    %47 = vector.shape_cast %46 : vector<32xf32> to vector<32x1xf32>
    %48 = arith.addf %43, %47 : vector<32x1xf32>
    %c0_30 = arith.constant 0 : index
    %c0_31 = arith.constant 0 : index
    %49 = vector.load %arg9[%c0_30, %c0_31] : memref<32x1xf32, #tpu.memory_space<vmem>>, vector<32x1xf32>
    tpu.vector_store %arg9[%c0_30, %c0_31], %48 {strides = array<i32>} : memref<32x1xf32, #tpu.memory_space<vmem>>, vector<32x1xf32>,
    %c0_32 = arith.constant 0 : index
    %c0_33 = arith.constant 0 : index
    %50 = vector.load %arg7[%c0_32, %c0_33] : memref<32x1xf32, #tpu.memory_space<vmem>>, vector<32x1xf32>
    tpu.vector_store %arg7[%c0_32, %c0_33], %29 {strides = array<i32>} : memref<32x1xf32, #tpu.memory_space<vmem>>, vector<32x1xf32>,
    %c0_i32_34 = arith.constant 0 : i32
    %51 = arith.cmpi eq, %arg1, %c0_i32_34 : i32
    %52 = arith.extui %51 : i1 to i32
    %c0_i32_35 = arith.constant 0 : i32
    %53 = arith.cmpi ne, %52, %c0_i32_35 : i32
    scf.if %53 {
      %c0_36 = arith.constant 0 : index
      %c0_37 = arith.constant 0 : index
      %54 = vector.load %arg9[%c0_36, %c0_37] : memref<32x1xf32, #tpu.memory_space<vmem>>, vector<32x1xf32>
      %c0_38 = arith.constant 0 : index
      %c0_39 = arith.constant 0 : index
      %55 = vector.load %arg8[%c0_38, %c0_39] : memref<32x1xf32, #tpu.memory_space<vmem>>, vector<32x1xf32>
      %56 = tpu.reciprocal %55 : vector<32x1xf32> -> vector<32x1xf32>
      %57 = arith.mulf %54, %56 : vector<32x1xf32>
      %c0_40 = arith.constant 0 : index
      %c0_41 = arith.constant 0 : index
      %58 = vector.load %arg7[%c0_40, %c0_41] : memref<32x1xf32, #tpu.memory_space<vmem>>, vector<32x1xf32>
      %c0_42 = arith.constant 0 : index
      %c0_43 = arith.constant 0 : index
      %59 = vector.load %arg8[%c0_42, %c0_43] : memref<32x1xf32, #tpu.memory_space<vmem>>, vector<32x1xf32>
      %60 = math.log %59 : vector<32x1xf32>
      %61 = arith.addf %58, %60 : vector<32x1xf32>
      %62 = arith.subf %57, %61 : vector<32x1xf32>
      %c0_44 = arith.constant 0 : index
      %c0_45 = arith.constant 0 : index
      %63 = vector.load %arg5[%c0_44, %c0_45] : memref<32x1xf32, #tpu.memory_space<vmem>>, vector<32x1xf32>
      %c0_46 = arith.constant 0 : index
      %c0_47 = arith.constant 0 : index
      %64 = vector.load %arg6[%c0_46, %c0_47] : memref<32x1xf32, #tpu.memory_space<vmem>>, vector<32x1xf32>
      %65 = math.log %64 : vector<32x1xf32>
      %66 = arith.addf %63, %65 : vector<32x1xf32>
      %67 = arith.addf %62, %66 : vector<32x1xf32>
      %68 = vector.shape_cast %67 : vector<32x1xf32> to vector<1x32x1xf32>
      %cst_48 = arith.constant dense<0.000000e+00> : vector<1xf32>
      %69 = vector.multi_reduction <add>, %68, %cst_48 [1, 2] : vector<1x32x1xf32> to vector<1xf32>
      %70 = vector.shape_cast %69 : vector<1xf32> to vector<1x1x1xf32>
      %71 = vector.extract %70[0, 0, 0] : f32 from vector<1x1x1xf32>
      %72 = vector.broadcast %71 : f32 to vector<8x128xf32>
      %c0_49 = arith.constant 0 : index
      %c0_50 = arith.constant 0 : index
      %73 = vector.load %arg4[%c0_49, %c0_50] : memref<8x128xf32, #tpu.memory_space<vmem>>, vector<8x128xf32>
      tpu.vector_store %arg4[%c0_49, %c0_50], %72 {strides = array<i32>} : memref<8x128xf32, #tpu.memory_space<vmem>>, vector<8x128xf32>,
    } else {
    }
    return
  }
  func.func @transform_0(%arg0: i32, %arg1: i32) -> (i32, i32) {
    %c0_i32 = arith.constant 0 : i32
    return %arg0, %arg1 : i32, i32
  }
  func.func @transform_1(%arg0: i32, %arg1: i32) -> (i32, i32) {
    %c0_i32 = arith.constant 0 : i32
    return %arg0, %arg1 : i32, i32
  }
  func.func @transform_2(%arg0: i32, %arg1: i32) -> (i32, i32) {
    %c0_i32 = arith.constant 0 : i32
    %c0_i32_0 = arith.constant 0 : i32
    return %arg0, %c0_i32 : i32, i32
  }
}

</mosaic_0001>

<llo_original>
// kernel: tpu_custom_call.1
$region0: #{tpu_custom_call.1}
  #allocation0 [shape = 'u32[]', space=smem, size = 0x4, offset = 0x4, fixed_abs, tag = 'smem constant byte address 0x4 - core index']
  #allocation1 [shape = 'u32[144,128]{1,0:T(1,128)}', space=vmem, size = 0x12000, scoped, tag = 'internal scratch']
  #allocation2 [shape = 'f32[32,1]{1,0:T(8,128)}', space=vmem, size = 0x4000, scoped, tag = 'scratch operand']
  #allocation3 [shape = 'f32[32,1]{1,0:T(8,128)}', space=vmem, size = 0x4000, scoped, tag = 'scratch operand']
  #allocation4 [shape = 'f32[32,1]{1,0:T(8,128)}', space=vmem, size = 0x4000, scoped, tag = 'scratch operand']
  #allocation5 [shape = 'f32[32,1]{1,0:T(8,128)}', space=vmem, size = 0x4000, scoped, tag = 'scratch operand']
  #allocation6 [shape = 'f32[32,1]{1,0:T(8,128)}', space=vmem, size = 0x4000, scoped, tag = 'scratch operand']
  %s0 = inlined_call_operand.hbm [shape: f32[64,256], index: 0, kind: input, shape index: {}]
  %s1 = inlined_call_operand.hbm [shape: f32[64,256], index: 1, kind: input, shape index: {}]
  %s2 = inlined_call_operand.hbm [shape: f32[16,128], index: 2, kind: output, shape index: {}]
  %s3 = sld [smem:[#allocation0]]
  $region57: #{tpu_custom_call.1} parent=0
    _
  %s5 = ssub.s32 1, %s3
  %s6 = scalar_select 0, %s5, %s3
  $region1: #{tpu_custom_call.1} parent=0
    #allocation7 [shape = 'u8[65536]{0}', space=vmem, size = 0x10000, scoped, tag = 'input window, operand 0']
    #allocation8 [shape = 's32[2]{0}', space=sflag, size = 0x8, scoped, tag = 'scoped memory for tpu_custom_call.1']
    #allocation9 [shape = 's32[2]{0}', space=sflag, size = 0x8, scoped, tag = 'scoped memory for tpu_custom_call.1']
    #allocation10 [shape = 'u8[65536]{0}', space=vmem, size = 0x10000, scoped, tag = 'input window, operand 1']
    #allocation11 [shape = 's32[2]{0}', space=sflag, size = 0x8, scoped, tag = 'scoped memory for tpu_custom_call.1']
    #allocation12 [shape = 'u8[8192]{0}', space=vmem, size = 0x2000, scoped, tag = 'output window, operand 0']
    %7 = vsyncpa [#allocation8], 0
    %s8 = scalar_lea.sflag [#allocation8], 1
    %9 = vsyncpa %s8, 0
    %10 = vsyncpa [#allocation11], 0
    %s11 = scalar_lea.sflag [#allocation11], 1
    %12 = vsyncpa %s11, 0
    %13 = vsyncpa [#allocation9], 0
    %s14 = scalar_lea.sflag [#allocation9], 1
    %15 = vsyncpa %s14, 0
    loop: start=0, step=1, limit=4
    $region2: #{tpu_custom_call.1} parent=1 // loop_pre_header
      _
    $region3: #{tpu_custom_call.1} parent=1 // loop_header
      %s17 = sphi 0, %s21
      %p18 = scmp.ge.s32.totalorder %s17, 4
      %s24 = sphi 0, %s36
      %s25 = sphi 0, %s32
      %s26 = sphi 0, %s24
      %s27 = sphi 0, %s25
      %s28 = sphi 0, %s26
      %s29 = sphi 0, %s27
      %s41 = sphi 0, %s43
      %s44 = sphi 0, %s41
      %s45 = sphi 0, %s44
      %s61 = sphi 0, %s45
      %s69 = sphi 0, %s71
      %s72 = sphi 0, %s69
      %s73 = sphi 0, %s72
      %s89 = sphi 0, %s73
      %s95 = sphi 0, %s97
      %s98 = sphi 0, %s95
      %s99 = sphi 0, %s98
      %s115 = sphi 0, %s99
    $region4: #{tpu_custom_call.1} parent=1 // loop_header_branch
      %20 = sbr.rel (%p18) target = $region8
    $region5: #{tpu_custom_call.1} parent=1 // loop_body
      %s22 = ssub.s32 %s17, 1
      %s23 = ssub.s32 %s17, 2
      %s30 = sadd.s32 1, %s25
      %p31 = scmp.ge.s32.totalorder %s30, 1
      %s32 = scalar_select %p31, 0, %s30
      %s33 = sadd.s32 1, %s24
      %s34 = scalar_select %p31, %s33, %s24
      %p35 = scmp.ge.s32.totalorder %s34, 2
      %s36 = scalar_select %p35, 0, %s34
      %s37 = ssub.s32 %s24, %s36
      %s38 = ssub.s32 %s25, %s32
      %s39 = sor.u32 %s37, %s38
      %p40 = scmp.eq.s32.totalorder %s39, 0
      %s42 = sadd.s32 %s41, 1
      %s43 = scalar_select %p40, %s41, %s42
      %p46 = pneg %p40
      %p47 = scmp.eq.s32.totalorder %s17, 1
      %p48 = por %p46, %p47
      %p49 = scmp.ne.s32.totalorder %s41, %s44
      %p50 = scmp.eq.s32.totalorder %s17, 0
      %p51 = por %p49, %p50
      %p52 = scmp.ne.s32.totalorder %s41, %s44
      %p53 = scmp.eq.s32.totalorder %s22, 1
      %p54 = por %p52, %p53
      %p55 = scmp.ne.s32.totalorder %s44, %s45
      %p56 = scmp.eq.s32.totalorder %s22, 0
      %p57 = por %p55, %p56
      %p58 = scmp.ne.s32.totalorder %s44, %s45
      %p59 = scmp.eq.s32.totalorder %s23, 1
      %p60 = por %p58, %p59
      %p62 = scmp.ne.s32.totalorder %s45, %s61
      %p63 = scmp.eq.s32.totalorder %s23, 0
      %p64 = por %p62, %p63
      %s65 = ssub.s32 %s24, %s36
      %s66 = ssub.s32 %s25, %s32
      %s67 = sor.u32 %s65, %s66
      %p68 = scmp.eq.s32.totalorder %s67, 0
      %s70 = sadd.s32 %s69, 1
      %s71 = scalar_select %p68, %s69, %s70
      %p74 = pneg %p68
      %p75 = scmp.eq.s32.totalorder %s17, 1
      %p76 = por %p74, %p75
      %p77 = scmp.ne.s32.totalorder %s69, %s72
      %p78 = scmp.eq.s32.totalorder %s17, 0
      %p79 = por %p77, %p78
      %p80 = scmp.ne.s32.totalorder %s69, %s72
      %p81 = scmp.eq.s32.totalorder %s22, 1
      %p82 = por %p80, %p81
      %p83 = scmp.ne.s32.totalorder %s72, %s73
      %p84 = scmp.eq.s32.totalorder %s22, 0
      %p85 = por %p83, %p84
      %p86 = scmp.ne.s32.totalorder %s72, %s73
      %p87 = scmp.eq.s32.totalorder %s23, 1
      %p88 = por %p86, %p87
      %p90 = scmp.ne.s32.totalorder %s73, %s89
      %p91 = scmp.eq.s32.totalorder %s23, 0
      %p92 = por %p90, %p91
      %s93 = ssub.s32 %s24, %s36
      %p94 = scmp.eq.s32.totalorder %s93, 0
      %s96 = sadd.s32 %s95, 1
      %s97 = scalar_select %p94, %s95, %s96
      %p100 = pneg %p94
      %p101 = scmp.eq.s32.totalorder %s17, 1
      %p102 = por %p100, %p101
      %p103 = scmp.ne.s32.totalorder %s95, %s98
      %p104 = scmp.eq.s32.totalorder %s17, 0
      %p105 = por %p103, %p104
      %p106 = scmp.ne.s32.totalorder %s95, %s98
      %p107 = scmp.eq.s32.totalorder %s22, 1
      %p108 = por %p106, %p107
      %p109 = scmp.ne.s32.totalorder %s98, %s99
      %p110 = scmp.eq.s32.totalorder %s22, 0
      %p111 = por %p109, %p110
      %p112 = scmp.ne.s32.totalorder %s98, %s99
      %p113 = scmp.eq.s32.totalorder %s23, 1
      %p114 = por %p112, %p113
      %p116 = scmp.ne.s32.totalorder %s99, %s115
      %p117 = scmp.eq.s32.totalorder %s23, 0
      %p118 = por %p116, %p117
      %p119 = scmp.le.s32.totalorder 1, %s17
      %p120 = scmp.lt.s32.totalorder %s17, 3
      %p121 = pnand %p119, %p120
      %p122 = pneg %p121
      // Predicated region
      $region9: #{tpu_custom_call.1} parent=5 // pred_check
        _
      $region10: #{tpu_custom_call.1} parent=5 // pred_check_branch
        %124 = sbr.rel (%p121) target = $region12
      $region11: #{tpu_custom_call.1} parent=5 // pred_region
        %s125 = ssub.s32 %s17, 1
      $region12: #{tpu_custom_call.1} parent=5 // pred_fallthru
        _
      %p126 = scmp.lt.s32.totalorder %s17, 2
      // Predicated region
      $region13: #{tpu_custom_call.1} parent=5 // pred_check
        %p127 = pneg %p126
      $region14: #{tpu_custom_call.1} parent=5 // pred_check_branch
        %129 = sbr.rel (%p127) target = $region16
      $region15: #{tpu_custom_call.1} parent=5 // pred_region
        // Predicated region
        $region17: #{tpu_custom_call.1} parent=15 // pred_check
          %p130 = pneg %p51
        $region18: #{tpu_custom_call.1} parent=15 // pred_check_branch
          %132 = sbr.rel (%p130) target = $region20
        $region19: #{tpu_custom_call.1} parent=15 // pred_region
          %s133 = sand.u32 %s41, 1
          %s134 = scalar_lea.sflag [#allocation8], %s133
          %s135 = sand.u32 %s41, 1
          %s136 = smul.addr %s135, 64
          %s137 = scalar_lea.vmem [#allocation7], %s136
          %s138 = smul.u32 4, %s24
          %s139 = smul.u32 2, %s25
          %s141 = ssub.s32 1024, 1024
          %142 = vsyncadd %s134, %s141
          %s143 = smul.addr %s138, 2
          %s144 = sadd.s32 %s139, %s143
          %s145 = smul.addr %s144, 128
          %s146 = scalar_lea.hbm %s0, %s145
          %s147 = sshll.u32 %s137, 4
          %s148 = int_to_ptr.vmem [resolvable:$true] %s147
          %153 = dma.hbm_to_vmem [thread:$0]  %s146, 1024, %s148, %s134, 256, 256, 16
        $region20: #{tpu_custom_call.1} parent=15 // pred_fallthru
          _
        // Predicated region
        $region21: #{tpu_custom_call.1} parent=15 // pred_check
          %p154 = pneg %p79
        $region22: #{tpu_custom_call.1} parent=15 // pred_check_branch
          %156 = sbr.rel (%p154) target = $region24
        $region23: #{tpu_custom_call.1} parent=15 // pred_region
          %s157 = sand.u32 %s69, 1
          %s158 = scalar_lea.sflag [#allocation11], %s157
          %s159 = sand.u32 %s69, 1
          %s160 = smul.addr %s159, 64
          %s161 = scalar_lea.vmem [#allocation10], %s160
          %s162 = smul.u32 4, %s24
          %s163 = smul.u32 2, %s25
          %s165 = ssub.s32 1024, 1024
          %166 = vsyncadd %s158, %s165
          %s167 = smul.addr %s162, 2
          %s168 = sadd.s32 %s163, %s167
          %s169 = smul.addr %s168, 128
          %s170 = scalar_lea.hbm %s1, %s169
          %s171 = sshll.u32 %s161, 4
          %s172 = int_to_ptr.vmem [resolvable:$true] %s171
          %177 = dma.hbm_to_vmem [thread:$0]  %s170, 1024, %s172, %s158, 256, 256, 16
        $region24: #{tpu_custom_call.1} parent=15 // pred_fallthru
          _
      $region16: #{tpu_custom_call.1} parent=5 // pred_fallthru
        _
      %p178 = scmp.le.s32.totalorder 1, %s17
      %p179 = scmp.lt.s32.totalorder %s17, 3
      %p180 = pnand %p178, %p179
      %p181 = pneg %p180
      // Predicated region
      $region25: #{tpu_custom_call.1} parent=5 // pred_check
        _
      $region26: #{tpu_custom_call.1} parent=5 // pred_check_branch
        %183 = sbr.rel (%p180) target = $region28
      $region27: #{tpu_custom_call.1} parent=5 // pred_region
        %s184 = ssub.s32 %s17, 1
        %s185 = sand.u32 %s44, 1
        %s186 = scalar_lea.sflag [#allocation8], %s185
        %s187 = sand.u32 %s44, 1
        %s188 = smul.addr %s187, 64
        %s189 = scalar_lea.vmem [#allocation7], %s188
        // Predicated region
        $region29: #{tpu_custom_call.1} parent=27 // pred_check
          %p190 = pneg %p57
        $region30: #{tpu_custom_call.1} parent=27 // pred_check_branch
          %192 = sbr.rel (%p190) target = $region32
        $region31: #{tpu_custom_call.1} parent=27 // pred_region
          %193 = dma.done %s186, 1024
        $region32: #{tpu_custom_call.1} parent=27 // pred_fallthru
          _
        %s194 = sand.u32 %s72, 1
        %s195 = scalar_lea.sflag [#allocation11], %s194
        %s196 = sand.u32 %s72, 1
        %s197 = smul.addr %s196, 64
        %s198 = scalar_lea.vmem [#allocation10], %s197
        // Predicated region
        $region33: #{tpu_custom_call.1} parent=27 // pred_check
          %p199 = pneg %p85
        $region34: #{tpu_custom_call.1} parent=27 // pred_check_branch
          %201 = sbr.rel (%p199) target = $region36
        $region35: #{tpu_custom_call.1} parent=27 // pred_region
          %202 = dma.done %s195, 1024
        $region36: #{tpu_custom_call.1} parent=27 // pred_fallthru
          _
        %s203 = sand.u32 %s44, 1
        %s204 = scalar_lea.sflag [#allocation8], %s203
        %s205 = sand.u32 %s44, 1
        %s206 = smul.addr %s205, 64
        %s207 = scalar_lea.vmem [#allocation7], %s206
        %p208 = pneg %p57
        %p209 = pneg %p54
        %s210 = sand.u32 %s72, 1
        %s211 = scalar_lea.sflag [#allocation11], %s210
        %s212 = sand.u32 %s72, 1
        %s213 = smul.addr %s212, 64
        %s214 = scalar_lea.vmem [#allocation10], %s213
        %p215 = pneg %p85
        %p216 = pneg %p82
        %p217 = pneg %p111
        %p218 = pneg %p108
        %s219 = sand.u32 %s98, 1
        %s220 = scalar_lea.sflag [#allocation9], %s219
        %s221 = sand.u32 %s98, 1
        %s222 = smul.addr %s221, 8
        %s223 = scalar_lea.vmem [#allocation12], %s222
        %s224 = smul.u32 4, %s26
        %s225 = smul.u32 2, %s27
        %s226 = smul.u32 4, %s26
        %s227 = smul.u32 2, %s27
        %p228 = scmp.eq.s32.totalorder %s27, 0
        // Predicated region
        $region37: #{tpu_custom_call.1} parent=27 // pred_check
          %p229 = pneg %p228
        $region38: #{tpu_custom_call.1} parent=27 // pred_check_branch
          %231 = sbr.rel (%p229) target = $region40
        $region39: #{tpu_custom_call.1} parent=27 // pred_region
          %vm232 = vcmask 7168
          %233 = vst.msk [vmem:[#allocation2] sm:$0xff] %vm232, -1e+30
          %234 = vst.msk [vmem:[#allocation2 + $0x8] sm:$0xff] %vm232, -1e+30
          %235 = vst.msk [vmem:[#allocation2 + $0x10] sm:$0xff] %vm232, -1e+30
          %236 = vst.msk [vmem:[#allocation2 + $0x18] sm:$0xff] %vm232, -1e+30
          %237 = vst.msk [vmem:[#allocation4] sm:$0xff] %vm232, -1e+30
          %238 = vst.msk [vmem:[#allocation4 + $0x8] sm:$0xff] %vm232, -1e+30
          %239 = vst.msk [vmem:[#allocation4 + $0x10] sm:$0xff] %vm232, -1e+30
          %240 = vst.msk [vmem:[#allocation4 + $0x18] sm:$0xff] %vm232, -1e+30
          %241 = vst.msk [vmem:[#allocation3] sm:$0xff] %vm232, 0.0
          %242 = vst.msk [vmem:[#allocation3 + $0x8] sm:$0xff] %vm232, 0.0
          %243 = vst.msk [vmem:[#allocation3 + $0x10] sm:$0xff] %vm232, 0.0
          %244 = vst.msk [vmem:[#allocation3 + $0x18] sm:$0xff] %vm232, 0.0
          %245 = vst.msk [vmem:[#allocation5] sm:$0xff] %vm232, 0.0
          %246 = vst.msk [vmem:[#allocation5 + $0x8] sm:$0xff] %vm232, 0.0
          %247 = vst.msk [vmem:[#allocation5 + $0x10] sm:$0xff] %vm232, 0.0
          %248 = vst.msk [vmem:[#allocation5 + $0x18] sm:$0xff] %vm232, 0.0
          %249 = vst.msk [vmem:[#allocation6] sm:$0xff] %vm232, 0.0
          %250 = vst.msk [vmem:[#allocation6 + $0x8] sm:$0xff] %vm232, 0.0
          %251 = vst.msk [vmem:[#allocation6 + $0x10] sm:$0xff] %vm232, 0.0
          %252 = vst.msk [vmem:[#allocation6 + $0x18] sm:$0xff] %vm232, 0.0
        $region40: #{tpu_custom_call.1} parent=27 // pred_fallthru
          _
        %v253 = vld [vmem:[%s189] sm:$0xff]
        %v254 = vld [vmem:[%s189 + $0x8] sm:$0xff]
        %v255 = vld [vmem:[%s189 + $0x10] sm:$0xff]
        %v256 = vld [vmem:[%s189 + $0x18] sm:$0xff]
        %v257 = vld [vmem:[%s189 + $0x20] sm:$0xff]
        %v258 = vld [vmem:[%s189 + $0x28] sm:$0xff]
        %v259 = vld [vmem:[%s189 + $0x30] sm:$0xff]
        %v260 = vld [vmem:[%s189 + $0x38] sm:$0xff]
        %v261 = vmul.f32 %v253, 0.25
        %v262 = vmul.f32 %v254, 0.25
        %v263 = vmul.f32 %v255, 0.25
        %v264 = vmul.f32 %v256, 0.25
        %v265 = vmul.f32 %v257, 0.25
        %v266 = vmul.f32 %v258, 0.25
        %v267 = vmul.f32 %v259, 0.25
        %v268 = vmul.f32 %v260, 0.25
        %v269 = vld [vmem:[%s198] sm:$0xff]
        %v270 = vld [vmem:[%s198 + $0x8] sm:$0xff]
        %v271 = vld [vmem:[%s198 + $0x10] sm:$0xff]
        %v272 = vld [vmem:[%s198 + $0x18] sm:$0xff]
        %v273 = vld [vmem:[%s198 + $0x20] sm:$0xff]
        %v274 = vld [vmem:[%s198 + $0x28] sm:$0xff]
        %v275 = vld [vmem:[%s198 + $0x30] sm:$0xff]
        %v276 = vld [vmem:[%s198 + $0x38] sm:$0xff]
        %v277 = vmul.f32 %v269, 0.25
        %v278 = vmul.f32 %v270, 0.25
        %v279 = vmul.f32 %v271, 0.25
        %v280 = vmul.f32 %v272, 0.25
        %v281 = vmul.f32 %v273, 0.25
        %v282 = vmul.f32 %v274, 0.25
        %v283 = vmul.f32 %v275, 0.25
        %v284 = vmul.f32 %v276, 0.25
        %v285 = vld [vmem:[#allocation2] sm:$0xff]
        %v286 = vld [vmem:[#allocation2 + $0x8] sm:$0xff]
        %v287 = vld [vmem:[#allocation2 + $0x10] sm:$0xff]
        %v288 = vld [vmem:[#allocation2 + $0x18] sm:$0xff]
        %v289 = vmax.f32 %v261, %v262
        %290 = vmax.xlane.f32.xlu0 %v289
        %v291 = vpop.xlane.xlu0 %290
        %v292 = vmax.f32 %v263, %v264
        %293 = vmax.xlane.f32.xlu0 %v292
        %v294 = vpop.xlane.xlu0 %293
        %v295 = vmax.f32 %v265, %v266
        %296 = vmax.xlane.f32.xlu0 %v295
        %v297 = vpop.xlane.xlu0 %296
        %v298 = vmax.f32 %v267, %v268
        %299 = vmax.xlane.f32.xlu0 %v298
        %v300 = vpop.xlane.xlu0 %299
        %v301 = vmax.f32 %v285, %v291
        %v302 = vmax.f32 %v286, %v294
        %v303 = vmax.f32 %v287, %v297
        %v304 = vmax.f32 %v288, %v300
        %v305 = vld [vmem:[#allocation3] sm:$0xff]
        %v306 = vld [vmem:[#allocation3 + $0x8] sm:$0xff]
        %v307 = vld [vmem:[#allocation3 + $0x10] sm:$0xff]
        %v308 = vld [vmem:[#allocation3 + $0x18] sm:$0xff]
        %v309 = vsub.f32 %v285, %v301
        %v310 = vsub.f32 %v286, %v302
        %v311 = vsub.f32 %v287, %v303
        %v312 = vsub.f32 %v288, %v304
        %v313 = vmul.f32 %v309, 1.442695
        %v314 = vpow.pop %v313
        %v315 = vmul.f32 %v310, 1.442695
        %v316 = vpow.pop %v315
        %v317 = vmul.f32 %v311, 1.442695
        %v318 = vpow.pop %v317
        %v319 = vmul.f32 %v312, 1.442695
        %v320 = vpow.pop %v319
        %v321 = vmul.f32 %v305, %v314
        %v322 = vmul.f32 %v306, %v316
        %v323 = vmul.f32 %v307, %v318
        %v324 = vmul.f32 %v308, %v320
        %326 = vset.pattern.permute.xlu0 0
        %327 = vperm.xlu0 %326, %v301
        %v328 = vpop.permute.xlu0 %327
        %331 = vset.pattern.permute.xlu0 0
        %332 = vperm.xlu0 %331, %v302
        %v333 = vpop.permute.xlu0 %332
        %336 = vset.pattern.permute.xlu0 0
        %337 = vperm.xlu0 %336, %v303
        %v338 = vpop.permute.xlu0 %337
        %341 = vset.pattern.permute.xlu0 0
        %342 = vperm.xlu0 %341, %v304
        %v343 = vpop.permute.xlu0 %342
        %v345 = vsub.f32 %v261, %v328
        %v346 = vsub.f32 %v262, %v328
        %v347 = vsub.f32 %v263, %v333
        %v348 = vsub.f32 %v264, %v333
        %v349 = vsub.f32 %v265, %v338
        %v350 = vsub.f32 %v266, %v338
        %v351 = vsub.f32 %v267, %v343
        %v352 = vsub.f32 %v268, %v343
        %v353 = vmul.f32 %v345, 1.442695
        %v354 = vpow.pop %v353
        %v355 = vmul.f32 %v346, 1.442695
        %v356 = vpow.pop %v355
        %v357 = vmul.f32 %v347, 1.442695
        %v358 = vpow.pop %v357
        %v359 = vmul.f32 %v348, 1.442695
        %v360 = vpow.pop %v359
        %v361 = vmul.f32 %v349, 1.442695
        %v362 = vpow.pop %v361
        %v363 = vmul.f32 %v350, 1.442695
        %v364 = vpow.pop %v363
        %v365 = vmul.f32 %v351, 1.442695
        %v366 = vpow.pop %v365
        %v367 = vmul.f32 %v352, 1.442695
        %v368 = vpow.pop %v367
        %v369 = vadd.f32 %v354, %v356
        %370 = vadd.xlane.f32.xlu0 %v369
        %v371 = vpop.xlane.xlu0 %370
        %v372 = vadd.f32 %v358, %v360
        %373 = vadd.xlane.f32.xlu0 %v372
        %v374 = vpop.xlane.xlu0 %373
        %v375 = vadd.f32 %v362, %v364
        %376 = vadd.xlane.f32.xlu0 %v375
        %v377 = vpop.xlane.xlu0 %376
        %v378 = vadd.f32 %v366, %v368
        %379 = vadd.xlane.f32.xlu0 %v378
        %v380 = vpop.xlane.xlu0 %379
        %v381 = vadd.f32 %v321, %v371
        %v382 = vadd.f32 %v322, %v374
        %v383 = vadd.f32 %v323, %v377
        %v384 = vadd.f32 %v324, %v380
        %vm385 = vcmask 7168
        %386 = vst.msk [vmem:[#allocation3] sm:$0xff] %vm385, %v381
        %387 = vst.msk [vmem:[#allocation3 + $0x8] sm:$0xff] %vm385, %v382
        %388 = vst.msk [vmem:[#allocation3 + $0x10] sm:$0xff] %vm385, %v383
        %389 = vst.msk [vmem:[#allocation3 + $0x18] sm:$0xff] %vm385, %v384
        %390 = vst.msk [vmem:[#allocation2] sm:$0xff] %vm385, %v301
        %391 = vst.msk [vmem:[#allocation2 + $0x8] sm:$0xff] %vm385, %v302
        %392 = vst.msk [vmem:[#allocation2 + $0x10] sm:$0xff] %vm385, %v303
        %393 = vst.msk [vmem:[#allocation2 + $0x18] sm:$0xff] %vm385, %v304
        %v394 = vld [vmem:[#allocation4] sm:$0xff]
        %v395 = vld [vmem:[#allocation4 + $0x8] sm:$0xff]
        %v396 = vld [vmem:[#allocation4 + $0x10] sm:$0xff]
        %v397 = vld [vmem:[#allocation4 + $0x18] sm:$0xff]
        %v398 = vmax.f32 %v277, %v278
        %399 = vmax.xlane.f32.xlu0 %v398
        %v400 = vpop.xlane.xlu0 %399
        %v401 = vmax.f32 %v279, %v280
        %402 = vmax.xlane.f32.xlu0 %v401
        %v403 = vpop.xlane.xlu0 %402
        %v404 = vmax.f32 %v281, %v282
        %405 = vmax.xlane.f32.xlu0 %v404
        %v406 = vpop.xlane.xlu0 %405
        %v407 = vmax.f32 %v283, %v284
        %408 = vmax.xlane.f32.xlu0 %v407
        %v409 = vpop.xlane.xlu0 %408
        %v410 = vmax.f32 %v394, %v400
        %v411 = vmax.f32 %v395, %v403
        %v412 = vmax.f32 %v396, %v406
        %v413 = vmax.f32 %v397, %v409
        %v414 = vsub.f32 %v394, %v410
        %v415 = vsub.f32 %v395, %v411
        %v416 = vsub.f32 %v396, %v412
        %v417 = vsub.f32 %v397, %v413
        %v418 = vmul.f32 %v414, 1.442695
        %v419 = vpow.pop %v418
        %v420 = vmul.f32 %v415, 1.442695
        %v421 = vpow.pop %v420
        %v422 = vmul.f32 %v416, 1.442695
        %v423 = vpow.pop %v422
        %v424 = vmul.f32 %v417, 1.442695
        %v425 = vpow.pop %v424
        %427 = vset.pattern.permute.xlu0 0
        %428 = vperm.xlu0 %427, %v410
        %v429 = vpop.permute.xlu0 %428
        %432 = vset.pattern.permute.xlu0 0
        %433 = vperm.xlu0 %432, %v411
        %v434 = vpop.permute.xlu0 %433
        %437 = vset.pattern.permute.xlu0 0
        %438 = vperm.xlu0 %437, %v412
        %v439 = vpop.permute.xlu0 %438
        %442 = vset.pattern.permute.xlu0 0
        %443 = vperm.xlu0 %442, %v413
        %v444 = vpop.permute.xlu0 %443
        %v446 = vsub.f32 %v277, %v429
        %v447 = vsub.f32 %v278, %v429
        %v448 = vsub.f32 %v279, %v434
        %v449 = vsub.f32 %v280, %v434
        %v450 = vsub.f32 %v281, %v439
        %v451 = vsub.f32 %v282, %v439
        %v452 = vsub.f32 %v283, %v444
        %v453 = vsub.f32 %v284, %v444
        %v454 = vmul.f32 %v446, 1.442695
        %v455 = vpow.pop %v454
        %v456 = vmul.f32 %v447, 1.442695
        %v457 = vpow.pop %v456
        %v458 = vmul.f32 %v448, 1.442695
        %v459 = vpow.pop %v458
        %v460 = vmul.f32 %v449, 1.442695
        %v461 = vpow.pop %v460
        %v462 = vmul.f32 %v450, 1.442695
        %v463 = vpow.pop %v462
        %v464 = vmul.f32 %v451, 1.442695
        %v465 = vpow.pop %v464
        %v466 = vmul.f32 %v452, 1.442695
        %v467 = vpow.pop %v466
        %v468 = vmul.f32 %v453, 1.442695
        %v469 = vpow.pop %v468
        %v470 = vld [vmem:[#allocation5] sm:$0xff]
        %v471 = vld [vmem:[#allocation5 + $0x8] sm:$0xff]
        %v472 = vld [vmem:[#allocation5 + $0x10] sm:$0xff]
        %v473 = vld [vmem:[#allocation5 + $0x18] sm:$0xff]
        %v474 = vmul.f32 %v470, %v419
        %v475 = vmul.f32 %v471, %v421
        %v476 = vmul.f32 %v472, %v423
        %v477 = vmul.f32 %v473, %v425
        %v478 = vadd.f32 %v455, %v457
        %479 = vadd.xlane.f32.xlu0 %v478
        %v480 = vpop.xlane.xlu0 %479
        %v481 = vadd.f32 %v459, %v461
        %482 = vadd.xlane.f32.xlu0 %v481
        %v483 = vpop.xlane.xlu0 %482
        %v484 = vadd.f32 %v463, %v465
        %485 = vadd.xlane.f32.xlu0 %v484
        %v486 = vpop.xlane.xlu0 %485
        %v487 = vadd.f32 %v467, %v469
        %488 = vadd.xlane.f32.xlu0 %v487
        %v489 = vpop.xlane.xlu0 %488
        %v490 = vadd.f32 %v474, %v480
        %v491 = vadd.f32 %v475, %v483
        %v492 = vadd.f32 %v476, %v486
        %v493 = vadd.f32 %v477, %v489
        %494 = vst.msk [vmem:[#allocation5] sm:$0xff] %vm385, %v490
        %495 = vst.msk [vmem:[#allocation5 + $0x8] sm:$0xff] %vm385, %v491
        %496 = vst.msk [vmem:[#allocation5 + $0x10] sm:$0xff] %vm385, %v492
        %497 = vst.msk [vmem:[#allocation5 + $0x18] sm:$0xff] %vm385, %v493
        %v498 = vld [vmem:[#allocation6] sm:$0xff]
        %v499 = vld [vmem:[#allocation6 + $0x8] sm:$0xff]
        %v500 = vld [vmem:[#allocation6 + $0x10] sm:$0xff]
        %v501 = vld [vmem:[#allocation6 + $0x18] sm:$0xff]
        %v502 = vmul.f32 %v498, %v419
        %v503 = vmul.f32 %v499, %v421
        %v504 = vmul.f32 %v500, %v423
        %v505 = vmul.f32 %v501, %v425
        %v506 = vsub.f32 %v277, %v261
        %v507 = vsub.f32 %v278, %v262
        %v508 = vsub.f32 %v279, %v263
        %v509 = vsub.f32 %v280, %v264
        %v510 = vsub.f32 %v281, %v265
        %v511 = vsub.f32 %v282, %v266
        %v512 = vsub.f32 %v283, %v267
        %v513 = vsub.f32 %v284, %v268
        %v514 = vmul.f32 %v455, %v506
        %v515 = vmul.f32 %v457, %v507
        %v516 = vmul.f32 %v459, %v508
        %v517 = vmul.f32 %v461, %v509
        %v518 = vmul.f32 %v463, %v510
        %v519 = vmul.f32 %v465, %v511
        %v520 = vmul.f32 %v467, %v512
        %v521 = vmul.f32 %v469, %v513
        %v522 = vadd.f32 %v514, %v515
        %523 = vadd.xlane.f32.xlu0 %v522
        %v524 = vpop.xlane.xlu0 %523
        %v525 = vadd.f32 %v516, %v517
        %526 = vadd.xlane.f32.xlu0 %v525
        %v527 = vpop.xlane.xlu0 %526
        %v528 = vadd.f32 %v518, %v519
        %529 = vadd.xlane.f32.xlu0 %v528
        %v530 = vpop.xlane.xlu0 %529
        %v531 = vadd.f32 %v520, %v521
        %532 = vadd.xlane.f32.xlu0 %v531
        %v533 = vpop.xlane.xlu0 %532
        %v534 = vadd.f32 %v502, %v524
        %v535 = vadd.f32 %v503, %v527
        %v536 = vadd.f32 %v504, %v530
        %v537 = vadd.f32 %v505, %v533
        %538 = vst.msk [vmem:[#allocation6] sm:$0xff] %vm385, %v534
        %539 = vst.msk [vmem:[#allocation6 + $0x8] sm:$0xff] %vm385, %v535
        %540 = vst.msk [vmem:[#allocation6 + $0x10] sm:$0xff] %vm385, %v536
        %541 = vst.msk [vmem:[#allocation6 + $0x18] sm:$0xff] %vm385, %v537
        %542 = vst.msk [vmem:[#allocation4] sm:$0xff] %vm385, %v410
        %543 = vst.msk [vmem:[#allocation4 + $0x8] sm:$0xff] %vm385, %v411
        %544 = vst.msk [vmem:[#allocation4 + $0x10] sm:$0xff] %vm385, %v412
        %545 = vst.msk [vmem:[#allocation4 + $0x18] sm:$0xff] %vm385, %v413
        // Predicated region
        $region41: #{tpu_custom_call.1} parent=27 // pred_check
          %p546 = pneg %p228
        $region42: #{tpu_custom_call.1} parent=27 // pred_check_branch
          %548 = sbr.rel (%p546) target = $region44
        $region43: #{tpu_custom_call.1} parent=27 // pred_region
          %v549 = vld [vmem:[#allocation6] sm:$0xff]
          %v550 = vld [vmem:[#allocation6 + $0x8] sm:$0xff]
          %v551 = vld [vmem:[#allocation6 + $0x10] sm:$0xff]
          %v552 = vld [vmem:[#allocation6 + $0x18] sm:$0xff]
          %v553 = vld [vmem:[#allocation5] sm:$0xff]
          %v554 = vld [vmem:[#allocation5 + $0x8] sm:$0xff]
          %v555 = vld [vmem:[#allocation5 + $0x10] sm:$0xff]
          %v556 = vld [vmem:[#allocation5 + $0x18] sm:$0xff]
          %v557 = vrcp.pop %v553
          %v558 = vrcp.pop %v554
          %v559 = vrcp.pop %v555
          %v560 = vrcp.pop %v556
          %v561 = vmul.f32 %v549, %v557
          %v562 = vmul.f32 %v550, %v558
          %v563 = vmul.f32 %v551, %v559
          %v564 = vmul.f32 %v552, %v560
          %v565 = vld [vmem:[#allocation4] sm:$0xff]
          %v566 = vld [vmem:[#allocation4 + $0x8] sm:$0xff]
          %v567 = vld [vmem:[#allocation4 + $0x10] sm:$0xff]
          %v568 = vld [vmem:[#allocation4 + $0x18] sm:$0xff]
          %v569 = vlog2.pop %v553
          %v570 = vmul.f32 %v569, 0.6931472
          %v571 = vlog2.pop %v554
          %v572 = vmul.f32 %v571, 0.6931472
          %v573 = vlog2.pop %v555
          %v574 = vmul.f32 %v573, 0.6931472
          %v575 = vlog2.pop %v556
          %v576 = vmul.f32 %v575, 0.6931472
          %v577 = vadd.f32 %v565, %v570
          %v578 = vadd.f32 %v566, %v572
          %v579 = vadd.f32 %v567, %v574
          %v580 = vadd.f32 %v568, %v576
          %v581 = vsub.f32 %v561, %v577
          %v582 = vsub.f32 %v562, %v578
          %v583 = vsub.f32 %v563, %v579
          %v584 = vsub.f32 %v564, %v580
          %v585 = vld [vmem:[#allocation2] sm:$0xff]
          %v586 = vld [vmem:[#allocation2 + $0x8] sm:$0xff]
          %v587 = vld [vmem:[#allocation2 + $0x10] sm:$0xff]
          %v588 = vld [vmem:[#allocation2 + $0x18] sm:$0xff]
          %v589 = vld [vmem:[#allocation3] sm:$0xff]
          %v590 = vld [vmem:[#allocation3 + $0x8] sm:$0xff]
          %v591 = vld [vmem:[#allocation3 + $0x10] sm:$0xff]
          %v592 = vld [vmem:[#allocation3 + $0x18] sm:$0xff]
          %v593 = vlog2.pop %v589
          %v594 = vmul.f32 %v593, 0.6931472
          %v595 = vlog2.pop %v590
          %v596 = vmul.f32 %v595, 0.6931472
          %v597 = vlog2.pop %v591
          %v598 = vmul.f32 %v597, 0.6931472
          %v599 = vlog2.pop %v592
          %v600 = vmul.f32 %v599, 0.6931472
          %v601 = vadd.f32 %v585, %v594
          %v602 = vadd.f32 %v586, %v596
          %v603 = vadd.f32 %v587, %v598
          %v604 = vadd.f32 %v588, %v600
          %v605 = vadd.f32 %v581, %v601
          %v606 = vadd.f32 %v582, %v602
          %v607 = vadd.f32 %v583, %v603
          %v608 = vadd.f32 %v584, %v604
          %v609 = vsel %vm385, %v605, 0.0
          %v610 = vsel %vm385, %v606, 0.0
          %v611 = vadd.f32 %v609, %v610
          %v612 = vsel %vm385, %v607, 0.0
          %v613 = vadd.f32 %v611, %v612
          %v614 = vsel %vm385, %v608, 0.0
          %v615 = vadd.f32 %v613, %v614
          %616 = vadd.xlane.f32.xlu0 %v615
          %v617 = vpop.xlane.xlu0 %616
          %v618 = vrot.slane %v617, 4
          %v619 = vadd.f32 %v617, %v618
          %v620 = vrot.slane %v619, 2
          %v621 = vadd.f32 %v619, %v620
          %v622 = vrot.slane %v621, 1
          %v623 = vadd.f32 %v621, %v622
          %s624 = vtos %v623
          %v625 = vstv %s624
          %626 = vst [vmem:[%s223] sm:$0xff] %v625
        $region44: #{tpu_custom_call.1} parent=27 // pred_fallthru
          _
        %s627 = sand.u32 %s98, 1
        %s628 = scalar_lea.sflag [#allocation9], %s627
        %s629 = sand.u32 %s98, 1
        %s630 = smul.addr %s629, 8
        %s631 = scalar_lea.vmem [#allocation12], %s630
        // Predicated region
        $region45: #{tpu_custom_call.1} parent=27 // pred_check
          %p632 = pneg %p108
        $region46: #{tpu_custom_call.1} parent=27 // pred_check_branch
          %634 = sbr.rel (%p632) target = $region48
        $region47: #{tpu_custom_call.1} parent=27 // pred_region
          %s636 = ssub.s32 128, 128
          %637 = vsyncadd %s628, %s636
          %s638 = smul.addr %s26, 128
          %s639 = scalar_lea.hbm %s2, %s638
          %s641 = sshll.u32 %s631, 4
          %s642 = int_to_ptr.vmem [resolvable:$true] %s641
          %644 = dma.vmem_to_hbm [thread:$0]  %s642, 128, %s639, %s628
        $region48: #{tpu_custom_call.1} parent=27 // pred_fallthru
          _
      $region28: #{tpu_custom_call.1} parent=5 // pred_fallthru
        _
      %p645 = scmp.le.s32.totalorder 2, %s17
      // Predicated region
      $region49: #{tpu_custom_call.1} parent=5 // pred_check
        %p646 = pneg %p645
      $region50: #{tpu_custom_call.1} parent=5 // pred_check_branch
        %648 = sbr.rel (%p646) target = $region52
      $region51: #{tpu_custom_call.1} parent=5 // pred_region
        %s649 = ssub.s32 %s17, 2
        // Predicated region
        $region53: #{tpu_custom_call.1} parent=51 // pred_check
          %p650 = pneg %p114
        $region54: #{tpu_custom_call.1} parent=51 // pred_check_branch
          %652 = sbr.rel (%p650) target = $region56
        $region55: #{tpu_custom_call.1} parent=51 // pred_region
          %s653 = sand.u32 %s99, 1
          %s654 = scalar_lea.sflag [#allocation9], %s653
          %s655 = sand.u32 %s99, 1
          %s656 = smul.addr %s655, 8
          %s657 = scalar_lea.vmem [#allocation12], %s656
          %658 = dma.done %s654, 128
        $region56: #{tpu_custom_call.1} parent=51 // pred_fallthru
          _
      $region52: #{tpu_custom_call.1} parent=5 // pred_fallthru
        _
    $region6: #{tpu_custom_call.1} parent=1 // loop_footer
      %s21 = sadd.s32 1, %s17
    $region7: #{tpu_custom_call.1} parent=1 // loop_footer_branch
      %16 = sbr.rel target = $region3
    $region8: #{tpu_custom_call.1} parent=1 // loop_exit
      _
    %659 = vsyncpa [#allocation8], 1
    %s660 = scalar_lea.sflag [#allocation8], 1
    %661 = vsyncpa %s660, 1
    %662 = vsyncpa [#allocation11], 1
    %s663 = scalar_lea.sflag [#allocation11], 1
    %664 = vsyncpa %s663, 1
    %665 = vsyncpa [#allocation9], 1
    %s666 = scalar_lea.sflag [#allocation9], 1
    %667 = vsyncpa %s666, 1

</llo_original>
